<compile_context>
chip_gen: v6e
topology: v6e:2x2x1
jax: 0.10.0
libtpu: 0.0.40
codegen_flags: <defaults>
</compile_context>

<pallas_src>
import math

import jax
import jax.numpy as jnp
from jax import lax
from jax.experimental import pallas as pl
from jax.experimental.pallas import tpu as pltpu


def _gaussian_tile_kernel(scale_ref, xi_ref, xj_ref, out_ref):
    """One (TM, TN) tile of the kernel matrix.

    scale_ref: SMEM (1,) f32 holding -1 / (2 * sigma^2).
    xi_ref:    VMEM (TM, F) row block of X.
    xj_ref:    VMEM (TN, F) column block of X.
    out_ref:   VMEM (TM, TN) output tile.
    """
    xi = xi_ref[...]
    xj = xj_ref[...]

    # Gram tile on the MXU; contract the feature axis of both operands so no
    # explicit transpose of xj is materialized.  Accumulate in f32.
    gram = lax.dot_general(
        xi, xj,
        dimension_numbers=(((1,), (1,)), ((), ())),
        preferred_element_type=jnp.float32)                      # (TM, TN)

    xi32 = xi.astype(jnp.float32)
    xj32 = xj.astype(jnp.float32)
    row_sq = jnp.sum(xi32 * xi32, axis=-1, keepdims=True)        # (TM, 1)
    col_sq = jnp.sum(xj32 * xj32, axis=-1, keepdims=True)        # (TN, 1)

    # ||x_i - x_j||^2 = ||x_i||^2 + ||x_j||^2 - 2 <x_i, x_j>, clamped >= 0 to
    # guard fp round-off from the Gram-trick cancellation (diagonal == 1).
    d2 = row_sq + jnp.transpose(col_sq) - 2.0 * gram
    d2 = jnp.maximum(d2, 0.0)

    scale = scale_ref[0]                                         # -1/(2 sigma^2)
    out_ref[...] = jnp.exp(d2 * scale).astype(out_ref.dtype)


def _round_up(x: int, m: int) -> int:
    return ((x + m - 1) // m) * m


def _choose_tiles(M: int, block_m, block_n):
    """Pick (TM, TN, M_pad) obeying the (8, 128) layout rule."""
    if block_m is not None and block_n is not None:
        return block_m, block_n, _round_up(M, math.lcm(block_m, block_n))
    if M <= 512:
        # Single block per axis: block == full dim satisfies alignment, and the
        # whole problem comfortably fits VMEM.
        return M, M, M
    m_pad = _round_up(M, 128)
    tn = 512 if m_pad % 512 == 0 else (256 if m_pad % 256 == 0 else 128)
    tm = 256 if m_pad % 256 == 0 else 128
    return tm, tn, m_pad


def gaussian_kernel_matrix(X: jax.Array, alpha: float = 1.0, *,
                           block_m: int | None = None,
                           block_n: int | None = None) -> jax.Array:
    """GaussianKernel.forward for X of shape (m, F) -> (m, m), float32."""
    M, F = X.shape
    X32 = X.astype(jnp.float32)

    # track_running_stats=True: sigma^2 = alpha * mean_{i,j} ||x_i - x_j||^2,
    # computed in closed form (O(M*F)) so the tiled pass needs no global
    # reduction over the (M, M) matrix:
    #   mean(d2) = 2 * mean_i ||x_i||^2 - 2 * ||mean_i x_i||^2
    mean_sq = jnp.mean(jnp.sum(X32 * X32, axis=-1))
    x_bar = jnp.mean(X32, axis=0)
    mean_d2 = 2.0 * (mean_sq - jnp.dot(x_bar, x_bar))
    sigma_square = alpha * jnp.maximum(mean_d2, 0.0)
    # NOTE: sigma_square == 0 (all rows identical) yields inf/nan, matching the
    # PyTorch reference behavior.
    scale = (-0.5 / sigma_square).astype(jnp.float32).reshape((1,))

    tm, tn, m_pad = _choose_tiles(M, block_m, block_n)
    x_p = X if m_pad == M else jnp.pad(X, ((0, m_pad - M), (0, 0)))

    grid = (m_pad // tm, m_pad // tn)
    itemsize = X.dtype.itemsize
    cost = pl.CostEstimate(
        flops=2 * m_pad * m_pad * F + 6 * m_pad * m_pad,
        transcendentals=m_pad * m_pad,
        bytes_accessed=(grid[0] + grid[1]) * m_pad * F * itemsize
        + m_pad * m_pad * 4,
    )

    out = pl.pallas_call(
        _gaussian_tile_kernel,
        out_shape=jax.ShapeDtypeStruct((m_pad, m_pad), jnp.float32),
        grid_spec=pltpu.PrefetchScalarGridSpec(
            num_scalar_prefetch=1,
            grid=grid,
            in_specs=[
                pl.BlockSpec((tm, F), lambda i, j, s: (i, 0)),   # row tile
                pl.BlockSpec((tn, F), lambda i, j, s: (j, 0)),   # column tile
            ],
            out_specs=pl.BlockSpec((tm, tn), lambda i, j, s: (i, j)),
        ),
        compiler_params=pltpu.CompilerParams(
            dimension_semantics=("parallel", "parallel")),
        cost_estimate=cost,
    )(scale, x_p, x_p)

    if m_pad != M:
        out = out[:M, :M]
    return out


def _reference(X: jax.Array, alpha: float = 1.0) -> jax.Array:
    # Pure-JAX transcription of the PyTorch forward (exact broadcast form).
    d2 = jnp.sum((X[None, :, :] - X[:, None, :]) ** 2, axis=2)
    sigma_square = alpha * jnp.mean(d2)
    return jnp.exp(-d2 / (2.0 * sigma_square))


if __name__ == "__main__":
    # Small case matching the module's (minibatch, F) contract — single tile.
    m, F = 8, 32
    X = jax.random.normal(jax.random.PRNGKey(0), (m, F), dtype=jnp.float32)
    out = jax.block_until_ready(gaussian_kernel_matrix(X, alpha=1.0))
    ref = _reference(X, alpha=1.0)
    assert out.shape == (m, m) and out.dtype == jnp.float32
    assert jnp.allclose(out, ref, rtol=1e-5, atol=1e-4), "mismatch (single tile)"

    # Multi-tile path with forced small blocks, including padding of a
    # non-multiple M (200 -> 256) to exercise the tiled/padded code path.
    m2, F2 = 200, 64
    X2 = jax.random.normal(jax.random.PRNGKey(1), (m2, F2), dtype=jnp.float32)
    out2 = jax.block_until_ready(
        gaussian_kernel_matrix(X2, alpha=1.0, block_m=64, block_n=128))
    ref2 = _reference(X2, alpha=1.0)
    assert out2.shape == (m2, m2)
    assert jnp.allclose(out2, ref2, rtol=1e-5, atol=1e-4), "mismatch (tiled)"

    print("KERNEL_OK")
</pallas_src>

<mosaic_0001>
module attributes {stable_mosaic.version = 11 : i64} {
  func.func @_gaussian_tile_kernel(%arg0: i32, %arg1: i32, %arg2: memref<1xf32, #tpu.memory_space<smem>>, %arg3: memref<8x32xf32, #tpu.memory_space<vmem>>, %arg4: memref<8x32xf32, #tpu.memory_space<vmem>>, %arg5: memref<8x8xf32, #tpu.memory_space<vmem>>) attributes {dimension_semantics = [#tpu.dimension_semantics<parallel>, #tpu.dimension_semantics<parallel>], iteration_bounds = array<i64: 1, 1>, scalar_prefetch = 1 : i64, scratch_operands = 0 : i64, tpu.core_type = #tpu.core_type<tc>, window_params = [{transform_indices = @transform_0, window_bounds = array<i64: 8, 32>}, {transform_indices = @transform_1, window_bounds = array<i64: 8, 32>}, {transform_indices = @transform_2, window_bounds = array<i64: 8, 8>}]} {
    %c0 = arith.constant 0 : index
    %c0_0 = arith.constant 0 : index
    %0 = vector.load %arg3[%c0, %c0_0] : memref<8x32xf32, #tpu.memory_space<vmem>>, vector<8x32xf32>
    %c0_1 = arith.constant 0 : index
    %c0_2 = arith.constant 0 : index
    %1 = vector.load %arg4[%c0_1, %c0_2] : memref<8x32xf32, #tpu.memory_space<vmem>>, vector<8x32xf32>
    %cst = arith.constant dense<0.000000e+00> : vector<8x8xf32>
    %2 = tpu.matmul %0, %1, %cst {dimension_numbers = #tpu.dot_dimension_numbers<[1], [1], [0], [0], [0, 0, 1, 0], [], []>} : vector<8x32xf32>, vector<8x32xf32>, vector<8x8xf32> -> vector<8x8xf32>
    %3 = arith.mulf %0, %0 : vector<8x32xf32>
    %cst_3 = arith.constant dense<0.000000e+00> : vector<8xf32>
    %4 = vector.multi_reduction <add>, %3, %cst_3 [1] : vector<8x32xf32> to vector<8xf32>
    %5 = vector.shape_cast %4 : vector<8xf32> to vector<8x1xf32>
    %6 = arith.mulf %1, %1 : vector<8x32xf32>
    %cst_4 = arith.constant dense<0.000000e+00> : vector<8xf32>
    %7 = vector.multi_reduction <add>, %6, %cst_4 [1] : vector<8x32xf32> to vector<8xf32>
    %8 = vector.shape_cast %7 : vector<8xf32> to vector<8x1xf32>
    %9 = tpu.transpose %8, [1, 0] : vector<8x1xf32> -> vector<1x8xf32>
    %10 = vector.broadcast %5 : vector<8x1xf32> to vector<8x8xf32>
    %11 = vector.broadcast %9 : vector<1x8xf32> to vector<8x8xf32>
    %12 = arith.addf %10, %11 : vector<8x8xf32>
    %cst_5 = arith.constant 2.000000e+00 : f32
    %13 = vector.broadcast %cst_5 : f32 to vector<8x8xf32>
    %14 = arith.mulf %13, %2 : vector<8x8xf32>
    %15 = arith.subf %12, %14 : vector<8x8xf32>
    %cst_6 = arith.constant 0.000000e+00 : f32
    %16 = vector.broadcast %cst_6 : f32 to vector<8x8xf32>
    %17 = arith.maximumf %15, %16 : vector<8x8xf32>
    %c0_7 = arith.constant 0 : index
    %18 = memref.load %arg2[%c0_7] : memref<1xf32, #tpu.memory_space<smem>>
    %19 = vector.broadcast %18 : f32 to vector<8x8xf32>
    %20 = arith.mulf %17, %19 : vector<8x8xf32>
    %21 = math.exp %20 : vector<8x8xf32>
    %c0_8 = arith.constant 0 : index
    %c0_9 = arith.constant 0 : index
    %22 = vector.load %arg5[%c0_8, %c0_9] : memref<8x8xf32, #tpu.memory_space<vmem>>, vector<8x8xf32>
    tpu.vector_store %arg5[%c0_8, %c0_9], %21 {strides = array<i32>} : memref<8x8xf32, #tpu.memory_space<vmem>>, vector<8x8xf32>,
    return
  }
  func.func @transform_0(%arg0: i32, %arg1: i32, %arg2: memref<1xf32, #tpu.memory_space<smem>>) -> (i32, i32) {
    %c0_i32 = arith.constant 0 : i32
    %c0_i32_0 = arith.constant 0 : i32
    return %arg0, %c0_i32 : i32, i32
  }
  func.func @transform_1(%arg0: i32, %arg1: i32, %arg2: memref<1xf32, #tpu.memory_space<smem>>) -> (i32, i32) {
    %c0_i32 = arith.constant 0 : i32
    %c0_i32_0 = arith.constant 0 : i32
    return %arg1, %c0_i32 : i32, i32
  }
  func.func @transform_2(%arg0: i32, %arg1: i32, %arg2: memref<1xf32, #tpu.memory_space<smem>>) -> (i32, i32) {
    %c0_i32 = arith.constant 0 : i32
    return %arg0, %arg1 : i32, i32
  }
}

</mosaic_0001>

<llo_original>
// kernel: tpu_custom_call.1
$region0: #{tpu_custom_call.1}
  #allocation0 [shape = 'u32[]', space=smem, size = 0x4, offset = 0x4, fixed_abs, tag = 'smem constant byte address 0x4 - core index']
  #allocation1 [shape = 'u32[144,128]{1,0:T(1,128)}', space=vmem, size = 0x12000, scoped, tag = 'internal scratch']
  #allocation2 [shape = 's32[1]{0}', space=sflag, size = 0x4, scoped, tag = 'scoped memory for tpu_custom_call.1']
  #allocation3 [shape = 'f32[1]{0:T(128)S(6)}', space=smem, size = 0x200, scoped, tag = 'prefetched SMEM operand 0']
  %s0 = inlined_call_operand.<no memory space> [shape: f32[1], index: 0, kind: input, shape index: {}]
  %s1 = inlined_call_operand.hbm [shape: f32[8,32], index: 1, kind: input, shape index: {}]
  %s2 = inlined_call_operand.hbm [shape: f32[8,32], index: 2, kind: input, shape index: {}]
  %s3 = inlined_call_operand.hbm [shape: f32[8,8], index: 3, kind: output, shape index: {}]
  %s4 = sld [smem:[#allocation0]]
  $region26: #{tpu_custom_call.1} parent=0
    _
  %s6 = ssub.s32 1, %s4
  %s7 = scalar_select 0, %s6, %s4
  %8 = sst [smem:[#allocation3]] %s0
  $region1: #{tpu_custom_call.1} parent=0
    #allocation4 [shape = 'u8[4096]{0}', space=vmem, size = 0x1000, scoped, tag = 'input window, operand 1, single buffered']
    #allocation5 [shape = 's32[1]{0}', space=sflag, size = 0x4, scoped, tag = 'scoped memory for tpu_custom_call.1']
    #allocation6 [shape = 's32[1]{0}', space=sflag, size = 0x4, scoped, tag = 'scoped memory for tpu_custom_call.1']
    #allocation7 [shape = 'u8[4096]{0}', space=vmem, size = 0x1000, scoped, tag = 'input window, operand 2, single buffered']
    #allocation8 [shape = 's32[1]{0}', space=sflag, size = 0x4, scoped, tag = 'scoped memory for tpu_custom_call.1']
    #allocation9 [shape = 'u8[4096]{0}', space=vmem, size = 0x1000, scoped, tag = 'output window, operand 0, single buffered']
    %9 = vsyncpa [#allocation5], 0
    %10 = vsyncpa [#allocation8], 0
    %11 = vsyncpa [#allocation6], 0
    // Predicated region
    $region2: #{tpu_custom_call.1} parent=1 // pred_check
      _
    $region3: #{tpu_custom_call.1} parent=1 // pred_check_branch
      %13 = sbr.rel (0) target = $region5
    $region4: #{tpu_custom_call.1} parent=1 // pred_region
      %s15 = ssub.s32 128, 128
      %16 = vsyncadd [#allocation5], %s15
      %s18 = sshll.u32 [#allocation4], 4
      %s19 = int_to_ptr.vmem [resolvable:$true] %s18
      %21 = dma.hbm_to_vmem [thread:$0]  %s1, 128, %s19, [#allocation5]
    $region5: #{tpu_custom_call.1} parent=1 // pred_fallthru
      _
    // Predicated region
    $region6: #{tpu_custom_call.1} parent=1 // pred_check
      _
    $region7: #{tpu_custom_call.1} parent=1 // pred_check_branch
      %23 = sbr.rel (0) target = $region9
    $region8: #{tpu_custom_call.1} parent=1 // pred_region
      %s25 = ssub.s32 128, 128
      %26 = vsyncadd [#allocation8], %s25
      %s28 = sshll.u32 [#allocation7], 4
      %s29 = int_to_ptr.vmem [resolvable:$true] %s28
      %31 = dma.hbm_to_vmem [thread:$0]  %s2, 128, %s29, [#allocation8]
    $region9: #{tpu_custom_call.1} parent=1 // pred_fallthru
      _
    // Predicated region
    $region10: #{tpu_custom_call.1} parent=1 // pred_check
      _
    $region11: #{tpu_custom_call.1} parent=1 // pred_check_branch
      %33 = sbr.rel (0) target = $region13
    $region12: #{tpu_custom_call.1} parent=1 // pred_region
      %34 = dma.done [#allocation5], 128
    $region13: #{tpu_custom_call.1} parent=1 // pred_fallthru
      _
    // Predicated region
    $region14: #{tpu_custom_call.1} parent=1 // pred_check
      _
    $region15: #{tpu_custom_call.1} parent=1 // pred_check_branch
      %36 = sbr.rel (0) target = $region17
    $region16: #{tpu_custom_call.1} parent=1 // pred_region
      %37 = dma.done [#allocation8], 128
    $region17: #{tpu_custom_call.1} parent=1 // pred_fallthru
      _
    %v38 = vld [vmem:[#allocation4] sm:$0xff]
    %v39 = vld [vmem:[#allocation7] sm:$0xff]
    %vm40 = vcmask 261120
    %v42 = vsel %vm40, %v38, 0
    %v45 = vsel %vm40, %v39, 0
    %47 = vmatprep.subr.mxu0 0.0
    %48 = vmatpush1.xpose.msra.mxu0 0.0
    %49 = vmatprep.subr.mxu0 0.0
    %50 = vmatpush1.xpose.msra.mxu0 0.0
    %51 = vmatprep.subr.mxu0 0.0
    %52 = vmatpush1.xpose.msra.mxu0 0.0
    %53 = vmatprep.subr.mxu0 0.0
    %54 = vmatpush1.xpose.msra.mxu0 0.0
    %55 = vmatprep.subr.mxu0 0.0
    %56 = vmatpush1.xpose.msra.mxu0 0.0
    %57 = vmatprep.subr.mxu0 0.0
    %58 = vmatpush1.xpose.msra.mxu0 0.0
    %59 = vmatprep.subr.mxu0 0.0
    %60 = vmatpush1.xpose.msra.mxu0 0.0
    %61 = vmatprep.subr.mxu0 0.0
    %62 = vmatpush1.xpose.msra.mxu0 0.0
    %63 = vmatprep.subr.mxu0 0.0
    %64 = vmatpush1.xpose.msra.mxu0 0.0
    %65 = vmatprep.subr.mxu0 0.0
    %66 = vmatpush1.xpose.msra.mxu0 0.0
    %67 = vmatprep.subr.mxu0 0.0
    %68 = vmatpush1.xpose.msra.mxu0 0.0
    %69 = vmatprep.subr.mxu0 0.0
    %70 = vmatpush1.xpose.msra.mxu0 0.0
    %71 = vmatprep.subr.mxu0 0.0
    %72 = vmatpush1.xpose.msra.mxu0 0.0
    %73 = vmatprep.subr.mxu0 0.0
    %74 = vmatpush1.xpose.msra.mxu0 0.0
    %75 = vmatprep.subr.mxu0 0.0
    %76 = vmatpush1.xpose.msra.mxu0 0.0
    %77 = vmatprep.subr.mxu0 0.0
    %78 = vmatpush1.xpose.msra.mxu0 %v45
    %79 = vmatprep.subr.mxu0 0.0
    %80 = vmatpush2.xpose.msra.mxu0 0.0
    %81 = vmatprep.subr.mxu0 0.0
    %82 = vmatpush2.xpose.msra.mxu0 0.0
    %83 = vmatprep.subr.mxu0 0.0
    %84 = vmatpush2.xpose.msra.mxu0 0.0
    %85 = vmatprep.subr.mxu0 0.0
    %86 = vmatpush2.xpose.msra.mxu0 0.0
    %87 = vmatprep.subr.mxu0 0.0
    %88 = vmatpush2.xpose.msra.mxu0 0.0
    %89 = vmatprep.subr.mxu0 0.0
    %90 = vmatpush2.xpose.msra.mxu0 0.0
    %91 = vmatprep.subr.mxu0 0.0
    %92 = vmatpush2.xpose.msra.mxu0 0.0
    %93 = vmatprep.subr.mxu0 0.0
    %94 = vmatpush2.xpose.msra.mxu0 0.0
    %95 = vmatprep.subr.mxu0 0.0
    %96 = vmatpush2.xpose.msra.mxu0 0.0
    %97 = vmatprep.subr.mxu0 0.0
    %98 = vmatpush2.xpose.msra.mxu0 0.0
    %99 = vmatprep.subr.mxu0 0.0
    %100 = vmatpush2.xpose.msra.mxu0 0.0
    %101 = vmatprep.subr.mxu0 0.0
    %102 = vmatpush2.xpose.msra.mxu0 0.0
    %103 = vmatprep.subr.mxu0 0.0
    %104 = vmatpush2.xpose.msra.mxu0 0.0
    %105 = vmatprep.subr.mxu0 0.0
    %106 = vmatpush2.xpose.msra.mxu0 0.0
    %107 = vmatprep.subr.mxu0 0.0
    %108 = vmatpush2.xpose.msra.mxu0 0.0
    %109 = vmatprep.subr.mxu0 0.0
    %110 = vmatpush2.xpose.msra.mxu0 0.0
    %111 = vmatprep.mubr.f32.mxu0 0.0
    %112 = vmatmul.mubr.f32.gmra.mxu0 %v42
    %v113 = vpop.f32.mrf.mxu0
    %v114 = vadd.f32 0.0, %v113
    %v115 = vpop.f32.mrf.mxu0
    %116 = vdwg.mxu0
    %v117 = vmul.f32 %v38, %v38
    %v118 = vsel %vm40, %v117, 0.0
    %119 = vadd.xlane.f32.xlu0 %v118
    %v120 = vpop.xlane.xlu0 %119
    %v121 = vmul.f32 %v39, %v39
    %v122 = vsel %vm40, %v121, 0.0
    %123 = vadd.xlane.f32.xlu0 %v122
    %v124 = vpop.xlane.xlu0 %123
    %125 = vxpose.xlu0.b32.start [1/16] %v124, 128
    %126 = vxpose.xlu0.b32.cont [2/16] 0.0, 128
    %127 = vxpose.xlu0.b32.cont [3/16] 0.0, 128
    %128 = vxpose.xlu0.b32.cont [4/16] 0.0, 128
    %129 = vxpose.xlu0.b32.cont [5/16] 0.0, 128
    %130 = vxpose.xlu0.b32.cont [6/16] 0.0, 128
    %131 = vxpose.xlu0.b32.cont [7/16] 0.0, 128
    %132 = vxpose.xlu0.b32.cont [8/16] 0.0, 128
    %133 = vxpose.xlu0.b32.cont [9/16] 0.0, 128
    %134 = vxpose.xlu0.b32.cont [10/16] 0.0, 128
    %135 = vxpose.xlu0.b32.cont [11/16] 0.0, 128
    %136 = vxpose.xlu0.b32.cont [12/16] 0.0, 128
    %137 = vxpose.xlu0.b32.cont [13/16] 0.0, 128
    %138 = vxpose.xlu0.b32.cont [14/16] 0.0, 128
    %139 = vxpose.xlu0.b32.cont [15/16] 0.0, 128
    %140 = vxpose.xlu0.b32.end [16/16] 0.0, 128
    %v141 = vpop.trf.xlu0
    %v142 = vpop.trf.xlu0
    %v143 = vpop.trf.xlu0
    %v144 = vpop.trf.xlu0
    %v145 = vpop.trf.xlu0
    %v146 = vpop.trf.xlu0
    %v147 = vpop.trf.xlu0
    %v148 = vpop.trf.xlu0
    %v149 = vpop.trf.xlu0
    %v150 = vpop.trf.xlu0
    %v151 = vpop.trf.xlu0
    %v152 = vpop.trf.xlu0
    %v153 = vpop.trf.xlu0
    %v154 = vpop.trf.xlu0
    %v155 = vpop.trf.xlu0
    %v156 = vpop.trf.xlu0
    %v157 = vlaneseq
    %v158 = vshrl.u32 %v157, 7
    %v159 = vsub.s32 0, %v158
    %v160 = vrot.slane %v141, %v159
    %v161 = vadd.f32 %v120, %v160
    %v162 = vmul.f32 %v114, 2.0
    %v163 = vsub.f32 %v161, %v162
    %v164 = vmax.f32 %v163, 0.0
    %s165 = sld [smem:[#allocation3]]
    %v166 = vstv %s165
    %v167 = vmul.f32 %v164, %v166
    %v168 = vmul.f32 %v167, 1.442695
    %v169 = vpow.pop %v168
    %vm170 = vcmask 64512
    %171 = vst.msk [vmem:[#allocation9] sm:$0xff] %vm170, %v169
    // Predicated region
    $region18: #{tpu_custom_call.1} parent=1 // pred_check
      _
    $region19: #{tpu_custom_call.1} parent=1 // pred_check_branch
      %173 = sbr.rel (0) target = $region21
    $region20: #{tpu_custom_call.1} parent=1 // pred_region
      %s175 = ssub.s32 128, 128
      %176 = vsyncadd [#allocation6], %s175
      %s178 = sshll.u32 [#allocation9], 4
      %s179 = int_to_ptr.vmem [resolvable:$true] %s178
      %181 = dma.vmem_to_hbm [thread:$0]  %s179, 128, %s3, [#allocation6]
    $region21: #{tpu_custom_call.1} parent=1 // pred_fallthru
      _
    // Predicated region
    $region22: #{tpu_custom_call.1} parent=1 // pred_check
      _
    $region23: #{tpu_custom_call.1} parent=1 // pred_check_branch
      %183 = sbr.rel (0) target = $region25
    $region24: #{tpu_custom_call.1} parent=1 // pred_region
      %184 = dma.done [#allocation6], 128
    $region25: #{tpu_custom_call.1} parent=1 // pred_fallthru
      _
    %185 = vsyncpa [#allocation5], 1
    %186 = vsyncpa [#allocation8], 1
    %187 = vsyncpa [#allocation6], 1

</llo_original>
